<compile_context>
chip_gen: v7x
topology: tpu7x:2x2x1
jax: 0.10.0
libtpu: 0.0.40
codegen_flags: <defaults>
</compile_context>

<pallas_src>
import functools

import jax
import jax.numpy as jnp
from jax.experimental import pallas as pl
from jax.experimental.pallas import tpu as pltpu


def adv_loss_kernel(logits_ref, target_ref, weight_ref, out_ref,
                    m_ref, l_ref, t_ref, *, n_valid, c_valid, mask_cols):
    r = pl.program_id(0)          # row tile (independent -> "parallel")
    ci = pl.program_id(1)         # C chunk (online-softmax reduction, innermost)

    tile_n, c_tile = logits_ref.shape

    @pl.when(ci == 0)
    def _init():
        m_ref[...] = jnp.full_like(m_ref, -jnp.inf)
        l_ref[...] = jnp.zeros_like(l_ref)
        t_ref[...] = jnp.zeros_like(t_ref)

    x = logits_ref[...]                                   # native dtype block
    tgt = target_ref[...]                                 # (tile_n, 1) int32
    col = (jax.lax.broadcasted_iota(jnp.int32, (tile_n, c_tile), 1)
           + ci * c_tile)

    if mask_cols:
        # Ragged last C chunk: push garbage columns to -inf (exp -> 0).
        neg = jnp.asarray(-jnp.inf, dtype=x.dtype)
        x = jnp.where(col < c_valid, x, neg)

    # Online log-sum-exp.  exp runs in the native dtype (bf16 EUP on v6e/v7x);
    # running stats stay f32.
    chunk_max = jnp.max(x, axis=-1, keepdims=True)        # native dtype
    p = jnp.exp(x - chunk_max)                            # native dtype
    p_sum = jnp.sum(p, axis=-1, keepdims=True, dtype=jnp.float32)

    cm = chunk_max.astype(jnp.float32)
    m_old = m_ref[...]
    m_new = jnp.maximum(m_old, cm)
    l_ref[...] = l_ref[...] * jnp.exp(m_old - m_new) + p_sum * jnp.exp(cm - m_new)
    m_ref[...] = m_new

    # Target-logit accumulation: exactly one column matches across all chunks
    # (select, not gather; garbage columns never match since tgt < c_valid).
    t_ref[...] += jnp.sum(jnp.where(col == tgt, x.astype(jnp.float32), 0.0),
                          axis=-1, keepdims=True)

    @pl.when(ci == pl.num_programs(1) - 1)
    def _finalize():
        loss = m_ref[...] + jnp.log(l_ref[...]) - t_ref[...]   # (tile_n, 1) CE
        rows = jax.lax.broadcasted_iota(jnp.int32, (tile_n, 1), 0) + r * tile_n
        # Select (not multiply) so garbage tail rows can never produce NaN.
        contrib = jnp.where(rows < n_valid, loss * weight_ref[...], 0.0)
        out_ref[0, 0] = jnp.sum(contrib)


def _round_up(x, m):
    return ((x + m - 1) // m) * m


def _pick_tiles(n, c, itemsize, *, vmem_budget=40 * 1024 * 1024,
                target_rows=1024):
    """Choose (tile_n, c_tile) so double-buffered blocks + temporaries fit VMEM."""
    # C chunking: keep full C while modest; otherwise 128-aligned chunks
    # (prefer one that divides C exactly so no column masking is needed).
    if c <= 8192:
        c_tile = c
    else:
        c_tile = 2048
        for cand in (4096, 2048, 1024, 512, 256, 128):
            if c % cand == 0:
                c_tile = cand
                break

    def vmem_bytes(tn):
        blk = tn * c_tile
        return (2 * blk * itemsize          # double-buffered native logits block
                + 4 * blk * 4               # ~4 f32 full-block body temporaries
                + 2 * 2 * tn * 128 * 4)     # lane-padded side streams, 2 bufs

    tn = max(8, min(_round_up(n, 8), _round_up(target_rows, 8)))
    while tn > 8 and vmem_bytes(tn) > vmem_budget:
        tn -= 8
    return tn, c_tile


def adv_loss(output, mask, target):
    """output: [N, C] logits (any float dtype); mask: [N] float; target: [N] int."""
    n, c = output.shape
    itemsize = jnp.dtype(output.dtype).itemsize
    tile_n, c_tile = _pick_tiles(n, c, itemsize)

    num_row_tiles = pl.cdiv(n, tile_n)
    num_c_tiles = pl.cdiv(c, c_tile)
    mask_cols = (c % c_tile) != 0

    target2 = target.reshape(n, 1).astype(jnp.int32)
    weight2 = (1.0 - 2.0 * mask.astype(jnp.float32)).reshape(n, 1)

    kernel = functools.partial(adv_loss_kernel, n_valid=n, c_valid=c,
                               mask_cols=mask_cols)

    partials = pl.pallas_call(
        kernel,
        out_shape=jax.ShapeDtypeStruct((num_row_tiles, 1), jnp.float32),
        grid_spec=pltpu.PrefetchScalarGridSpec(
            num_scalar_prefetch=0,
            grid=(num_row_tiles, num_c_tiles),
            in_specs=[
                pl.BlockSpec((tile_n, c_tile), lambda r, ci: (r, ci)),  # logits
                pl.BlockSpec((tile_n, 1), lambda r, ci: (r, 0)),        # targets
                pl.BlockSpec((tile_n, 1), lambda r, ci: (r, 0)),        # 1-2*mask
            ],
            out_specs=pl.BlockSpec((1, 1), lambda r, ci: (r, 0),
                                   memory_space=pltpu.MemorySpace.SMEM),
            scratch_shapes=[pltpu.VMEM((tile_n, 1), jnp.float32)] * 3,
        ),
        compiler_params=pltpu.CompilerParams(
            dimension_semantics=("parallel", "arbitrary"),
            vmem_limit_bytes=48 * 1024 * 1024,
        ),
        cost_estimate=pl.CostEstimate(
            flops=6 * n * c,
            transcendentals=n * c,
            bytes_accessed=n * c * itemsize + n * 8 + num_row_tiles * 4,
        ),
    )(output, target2, weight2)

    return jnp.sum(partials) / jnp.float32(n)


def adv_loss_ref(output, mask, target):
    """Pure-JAX reference matching nn.CrossEntropyLoss(reduction='none')."""
    lse = jax.nn.logsumexp(output.astype(jnp.float32), axis=-1)
    tgt_logit = jnp.take_along_axis(output.astype(jnp.float32),
                                    target[:, None], axis=-1)[:, 0]
    loss = lse - tgt_logit
    loss_special = -jnp.dot(loss, mask)
    loss_normal = jnp.dot(loss, 1.0 - mask)
    return (loss_special + loss_normal) / target.shape[0]


if __name__ == "__main__":
    # Case 1: tile-aligned batch.
    N, C = 8, 16
    k1, k2, k3 = jax.random.split(jax.random.PRNGKey(0), 3)
    output = jax.random.normal(k1, (N, C), dtype=jnp.float32)
    target = jax.random.randint(k2, (N,), 0, C, dtype=jnp.int32)
    mask = jax.random.bernoulli(k3, 0.5, (N,)).astype(jnp.float32)

    result = adv_loss(output, mask, target)
    jax.block_until_ready(result)
    expected = adv_loss_ref(output, mask, target)
    assert jnp.allclose(result, expected, atol=1e-5, rtol=1e-5), (result, expected)

    # Case 2: ragged batch (exercises row-validity select, no wrapper padding).
    N2, C2 = 13, 16
    k4, k5, k6 = jax.random.split(jax.random.PRNGKey(1), 3)
    output2 = jax.random.normal(k4, (N2, C2), dtype=jnp.float32)
    target2 = jax.random.randint(k5, (N2,), 0, C2, dtype=jnp.int32)
    mask2 = jax.random.bernoulli(k6, 0.5, (N2,)).astype(jnp.float32)

    result2 = adv_loss(output2, mask2, target2)
    jax.block_until_ready(result2)
    expected2 = adv_loss_ref(output2, mask2, target2)
    assert jnp.allclose(result2, expected2, atol=1e-5, rtol=1e-5), (result2, expected2)

    print("KERNEL_OK")
</pallas_src>

<mosaic_0001>
module attributes {stable_mosaic.version = 11 : i64} {
  func.func @adv_loss_kernel(%arg0: i32, %arg1: i32, %arg2: memref<8x16xf32, #tpu.memory_space<vmem>>, %arg3: memref<8x1xi32, #tpu.memory_space<vmem>>, %arg4: memref<8x1xf32, #tpu.memory_space<vmem>>, %arg5: memref<1x1xf32, #tpu.memory_space<smem>>, %arg6: memref<8x1xf32, #tpu.memory_space<vmem>>, %arg7: memref<8x1xf32, #tpu.memory_space<vmem>>, %arg8: memref<8x1xf32, #tpu.memory_space<vmem>>) attributes {dimension_semantics = [#tpu.dimension_semantics<parallel>, #tpu.dimension_semantics<arbitrary>], iteration_bounds = array<i64: 1, 1>, scalar_prefetch = 0 : i64, scratch_operands = 3 : i64, tpu.core_type = #tpu.core_type<tc>, window_params = [{transform_indices = @transform_0, window_bounds = array<i64: 8, 16>}, {transform_indices = @transform_1, window_bounds = array<i64: 8, 1>}, {transform_indices = @transform_2, window_bounds = array<i64: 8, 1>}, {transform_indices = @transform_3, window_bounds = array<i64: 1, 1>}]} {
    %c0_i32 = arith.constant 0 : i32
    %0 = arith.cmpi eq, %arg1, %c0_i32 : i32
    %1 = arith.extui %0 : i1 to i32
    %c0_i32_0 = arith.constant 0 : i32
    %2 = arith.cmpi ne, %1, %c0_i32_0 : i32
    scf.if %2 {
      %cst_21 = arith.constant 0xFF800000 : f32
      %40 = vector.broadcast %cst_21 : f32 to vector<8x1xf32>
      %c0_22 = arith.constant 0 : index
      %c0_23 = arith.constant 0 : index
      %41 = vector.load %arg6[%c0_22, %c0_23] : memref<8x1xf32, #tpu.memory_space<vmem>>, vector<8x1xf32>
      tpu.vector_store %arg6[%c0_22, %c0_23], %40 {strides = array<i32>} : memref<8x1xf32, #tpu.memory_space<vmem>>, vector<8x1xf32>,
      %cst_24 = arith.constant 0.000000e+00 : f32
      %42 = vector.broadcast %cst_24 : f32 to vector<8x1xf32>
      %c0_25 = arith.constant 0 : index
      %c0_26 = arith.constant 0 : index
      %43 = vector.load %arg7[%c0_25, %c0_26] : memref<8x1xf32, #tpu.memory_space<vmem>>, vector<8x1xf32>
      tpu.vector_store %arg7[%c0_25, %c0_26], %42 {strides = array<i32>} : memref<8x1xf32, #tpu.memory_space<vmem>>, vector<8x1xf32>,
      %cst_27 = arith.constant 0.000000e+00 : f32
      %44 = vector.broadcast %cst_27 : f32 to vector<8x1xf32>
      %c0_28 = arith.constant 0 : index
      %c0_29 = arith.constant 0 : index
      %45 = vector.load %arg8[%c0_28, %c0_29] : memref<8x1xf32, #tpu.memory_space<vmem>>, vector<8x1xf32>
      tpu.vector_store %arg8[%c0_28, %c0_29], %44 {strides = array<i32>} : memref<8x1xf32, #tpu.memory_space<vmem>>, vector<8x1xf32>,
    } else {
    }
    %c0 = arith.constant 0 : index
    %c0_1 = arith.constant 0 : index
    %3 = vector.load %arg2[%c0, %c0_1] : memref<8x16xf32, #tpu.memory_space<vmem>>, vector<8x16xf32>
    %c0_2 = arith.constant 0 : index
    %c0_3 = arith.constant 0 : index
    %4 = vector.load %arg3[%c0_2, %c0_3] : memref<8x1xi32, #tpu.memory_space<vmem>>, vector<8x1xi32>
    %5 = tpu.iota {dimensions = array<i32: 1>} : vector<8x16xi32>
    %c16_i32 = arith.constant 16 : i32
    %6 = arith.muli %arg1, %c16_i32 : i32
    %7 = vector.broadcast %6 : i32 to vector<8x16xi32>
    %8 = arith.addi %5, %7 : vector<8x16xi32>
    %cst = arith.constant dense<0xFF800000> : vector<8xf32>
    %9 = vector.multi_reduction <maximumf>, %3, %cst [1] : vector<8x16xf32> to vector<8xf32>
    %10 = vector.shape_cast %9 : vector<8xf32> to vector<8x1xf32>
    %11 = vector.broadcast %10 : vector<8x1xf32> to vector<8x16xf32>
    %12 = arith.subf %3, %11 : vector<8x16xf32>
    %13 = math.exp %12 : vector<8x16xf32>
    %cst_4 = arith.constant dense<0.000000e+00> : vector<8xf32>
    %14 = vector.multi_reduction <add>, %13, %cst_4 [1] : vector<8x16xf32> to vector<8xf32>
    %15 = vector.shape_cast %14 : vector<8xf32> to vector<8x1xf32>
    %c0_5 = arith.constant 0 : index
    %c0_6 = arith.constant 0 : index
    %16 = vector.load %arg6[%c0_5, %c0_6] : memref<8x1xf32, #tpu.memory_space<vmem>>, vector<8x1xf32>
    %17 = arith.maximumf %16, %10 : vector<8x1xf32>
    %c0_7 = arith.constant 0 : index
    %c0_8 = arith.constant 0 : index
    %18 = vector.load %arg7[%c0_7, %c0_8] : memref<8x1xf32, #tpu.memory_space<vmem>>, vector<8x1xf32>
    %19 = arith.subf %16, %17 : vector<8x1xf32>
    %20 = math.exp %19 : vector<8x1xf32>
    %21 = arith.mulf %18, %20 : vector<8x1xf32>
    %22 = arith.subf %10, %17 : vector<8x1xf32>
    %23 = math.exp %22 : vector<8x1xf32>
    %24 = arith.mulf %15, %23 : vector<8x1xf32>
    %25 = arith.addf %21, %24 : vector<8x1xf32>
    %c0_9 = arith.constant 0 : index
    %c0_10 = arith.constant 0 : index
    %26 = vector.load %arg7[%c0_9, %c0_10] : memref<8x1xf32, #tpu.memory_space<vmem>>, vector<8x1xf32>
    tpu.vector_store %arg7[%c0_9, %c0_10], %25 {strides = array<i32>} : memref<8x1xf32, #tpu.memory_space<vmem>>, vector<8x1xf32>,
    %c0_11 = arith.constant 0 : index
    %c0_12 = arith.constant 0 : index
    %27 = vector.load %arg6[%c0_11, %c0_12] : memref<8x1xf32, #tpu.memory_space<vmem>>, vector<8x1xf32>
    tpu.vector_store %arg6[%c0_11, %c0_12], %17 {strides = array<i32>} : memref<8x1xf32, #tpu.memory_space<vmem>>, vector<8x1xf32>,
    %c0_13 = arith.constant 0 : index
    %c0_14 = arith.constant 0 : index
    %28 = vector.load %arg8[%c0_13, %c0_14] : memref<8x1xf32, #tpu.memory_space<vmem>>, vector<8x1xf32>
    %29 = vector.broadcast %4 : vector<8x1xi32> to vector<8x16xi32>
    %30 = arith.cmpi eq, %8, %29 : vector<8x16xi32>
    %cst_15 = arith.constant 0.000000e+00 : f32
    %31 = vector.broadcast %cst_15 : f32 to vector<8x16xf32>
    %32 = arith.select %30, %3, %31 : vector<8x16xi1>, vector<8x16xf32>
    %cst_16 = arith.constant dense<0.000000e+00> : vector<8xf32>
    %33 = vector.multi_reduction <add>, %32, %cst_16 [1] : vector<8x16xf32> to vector<8xf32>
    %34 = vector.shape_cast %33 : vector<8xf32> to vector<8x1xf32>
    %35 = arith.addf %28, %34 : vector<8x1xf32>
    %c0_17 = arith.constant 0 : index
    %c0_18 = arith.constant 0 : index
    %36 = vector.load %arg8[%c0_17, %c0_18] : memref<8x1xf32, #tpu.memory_space<vmem>>, vector<8x1xf32>
    tpu.vector_store %arg8[%c0_17, %c0_18], %35 {strides = array<i32>} : memref<8x1xf32, #tpu.memory_space<vmem>>, vector<8x1xf32>,
    %c0_i32_19 = arith.constant 0 : i32
    %37 = arith.cmpi eq, %arg1, %c0_i32_19 : i32
    %38 = arith.extui %37 : i1 to i32
    %c0_i32_20 = arith.constant 0 : i32
    %39 = arith.cmpi ne, %38, %c0_i32_20 : i32
    scf.if %39 {
      %c0_21 = arith.constant 0 : index
      %c0_22 = arith.constant 0 : index
      %40 = vector.load %arg6[%c0_21, %c0_22] : memref<8x1xf32, #tpu.memory_space<vmem>>, vector<8x1xf32>
      %c0_23 = arith.constant 0 : index
      %c0_24 = arith.constant 0 : index
      %41 = vector.load %arg7[%c0_23, %c0_24] : memref<8x1xf32, #tpu.memory_space<vmem>>, vector<8x1xf32>
      %42 = math.log %41 : vector<8x1xf32>
      %43 = arith.addf %40, %42 : vector<8x1xf32>
      %c0_25 = arith.constant 0 : index
      %c0_26 = arith.constant 0 : index
      %44 = vector.load %arg8[%c0_25, %c0_26] : memref<8x1xf32, #tpu.memory_space<vmem>>, vector<8x1xf32>
      %45 = arith.subf %43, %44 : vector<8x1xf32>
      %46 = tpu.iota {dimensions = array<i32: 0>} : vector<8x1xi32>
      %c8_i32 = arith.constant 8 : i32
      %47 = arith.muli %arg0, %c8_i32 : i32
      %48 = vector.broadcast %47 : i32 to vector<8x1xi32>
      %49 = arith.addi %46, %48 : vector<8x1xi32>
      %c8_i32_27 = arith.constant 8 : i32
      %50 = vector.broadcast %c8_i32_27 : i32 to vector<8x1xi32>
      %51 = arith.cmpi slt, %49, %50 : vector<8x1xi32>
      %c0_28 = arith.constant 0 : index
      %c0_29 = arith.constant 0 : index
      %52 = vector.load %arg4[%c0_28, %c0_29] : memref<8x1xf32, #tpu.memory_space<vmem>>, vector<8x1xf32>
      %53 = arith.mulf %45, %52 : vector<8x1xf32>
      %cst_30 = arith.constant 0.000000e+00 : f32
      %54 = vector.broadcast %cst_30 : f32 to vector<8x1xf32>
      %55 = arith.select %51, %53, %54 : vector<8x1xi1>, vector<8x1xf32>
      %56 = vector.shape_cast %55 : vector<8x1xf32> to vector<1x8x1xf32>
      %cst_31 = arith.constant dense<0.000000e+00> : vector<1xf32>
      %57 = vector.multi_reduction <add>, %56, %cst_31 [1, 2] : vector<1x8x1xf32> to vector<1xf32>
      %58 = vector.shape_cast %57 : vector<1xf32> to vector<1x1x1xf32>
      %59 = vector.extract %58[0, 0, 0] : f32 from vector<1x1x1xf32>
      %c0_32 = arith.constant 0 : index
      %c0_33 = arith.constant 0 : index
      %60 = memref.load %arg5[%c0_32, %c0_33] : memref<1x1xf32, #tpu.memory_space<smem>>
      memref.store %59, %arg5[%c0_32, %c0_33] : memref<1x1xf32, #tpu.memory_space<smem>>
    } else {
    }
    return
  }
  func.func @transform_0(%arg0: i32, %arg1: i32) -> (i32, i32) {
    %c0_i32 = arith.constant 0 : i32
    return %arg0, %arg1 : i32, i32
  }
  func.func @transform_1(%arg0: i32, %arg1: i32) -> (i32, i32) {
    %c0_i32 = arith.constant 0 : i32
    %c0_i32_0 = arith.constant 0 : i32
    return %arg0, %c0_i32 : i32, i32
  }
  func.func @transform_2(%arg0: i32, %arg1: i32) -> (i32, i32) {
    %c0_i32 = arith.constant 0 : i32
    %c0_i32_0 = arith.constant 0 : i32
    return %arg0, %c0_i32 : i32, i32
  }
  func.func @transform_3(%arg0: i32, %arg1: i32) -> (i32, i32) {
    %c0_i32 = arith.constant 0 : i32
    %c0_i32_0 = arith.constant 0 : i32
    return %arg0, %c0_i32 : i32, i32
  }
}

</mosaic_0001>

<llo_original>
// kernel: tpu_custom_call.1
$region0: #{tpu_custom_call.1}
  #allocation0 [shape = 'u32[]', space=smem, size = 0x4, offset = 0x4, fixed_abs, tag = 'smem constant byte address 0x4 - core index']
  #allocation1 [shape = 'u32[144,128]{1,0:T(1,128)}', space=vmem, size = 0x12000, scoped, tag = 'internal scratch']
  #allocation2 [shape = 'f32[8,1]{1,0:T(8,128)}', space=vmem, size = 0x1000, scoped, tag = 'scratch operand']
  #allocation3 [shape = 'f32[8,1]{1,0:T(8,128)}', space=vmem, size = 0x1000, scoped, tag = 'scratch operand']
  #allocation4 [shape = 'f32[8,1]{1,0:T(8,128)}', space=vmem, size = 0x1000, scoped, tag = 'scratch operand']
  %s0 = inlined_call_operand.vmem [shape: f32[8,16], index: 0, kind: input, shape index: {}]
  %s1 = inlined_call_operand.vmem [shape: s32[8,1], index: 1, kind: input, shape index: {}]
  %s2 = inlined_call_operand.vmem [shape: f32[8,1], index: 2, kind: input, shape index: {}]
  %s3 = inlined_call_operand.hbm [shape: f32[1,1], index: 3, kind: output, shape index: {}]
  %s4 = sld [smem:[#allocation0]]
  $region30: #{tpu_custom_call.1} parent=0
    _
  %s6 = ssub.s32 1, %s4
  %s7 = scalar_select 0, %s6, %s4
  $region1: #{tpu_custom_call.1} parent=0
    #allocation5 [shape = 'u8[512]{0}', space=smem, size = 0x200, scoped, tag = 'output window, operand 0, single buffered']
    #allocation6 [shape = 's32[1]{0}', space=sflag, size = 0x4, scoped, tag = 'scoped memory for tpu_custom_call.1']
    %8 = vsyncpa [#allocation6], 0
    // Predicated region
    $region2: #{tpu_custom_call.1} parent=1 // pred_check
      _
    $region3: #{tpu_custom_call.1} parent=1 // pred_check_branch
      %10 = sbr.rel (0) target = $region5
    $region4: #{tpu_custom_call.1} parent=1 // pred_region
      _
    $region5: #{tpu_custom_call.1} parent=1 // pred_fallthru
      _
    // Predicated region
    $region6: #{tpu_custom_call.1} parent=1 // pred_check
      _
    $region7: #{tpu_custom_call.1} parent=1 // pred_check_branch
      %12 = sbr.rel (0) target = $region9
    $region8: #{tpu_custom_call.1} parent=1 // pred_region
      _
    $region9: #{tpu_custom_call.1} parent=1 // pred_fallthru
      _
    // Predicated region
    $region10: #{tpu_custom_call.1} parent=1 // pred_check
      _
    $region11: #{tpu_custom_call.1} parent=1 // pred_check_branch
      %14 = sbr.rel (0) target = $region13
    $region12: #{tpu_custom_call.1} parent=1 // pred_region
      _
    $region13: #{tpu_custom_call.1} parent=1 // pred_fallthru
      _
    %p15 = scmp.eq.s32.totalorder 0, 0
    // Predicated region
    $region14: #{tpu_custom_call.1} parent=1 // pred_check
      %p16 = pneg %p15
    $region15: #{tpu_custom_call.1} parent=1 // pred_check_branch
      %18 = sbr.rel (%p16) target = $region17
    $region16: #{tpu_custom_call.1} parent=1 // pred_region
      %vm19 = vcmask 7168
      %20 = vst.msk [vmem:[#allocation2] sm:$0xff] %vm19, -inf
      %21 = vst.msk [vmem:[#allocation3] sm:$0xff] %vm19, 0.0
      %22 = vst.msk [vmem:[#allocation4] sm:$0xff] %vm19, 0.0
    $region17: #{tpu_custom_call.1} parent=1 // pred_fallthru
      _
    %v23 = vld [vmem:[%s0] sm:$0xff]
    %v24 = vld [vmem:[%s1] sm:$0xff]
    %v25 = vlaneseq
    %v26 = vand.u32 %v25, 127
    %s27 = smul.u32 0, 16
    %v28 = vstv %s27
    %v29 = vadd.s32 %v26, %v28
    %vm30 = vcmask 130048
    %v31 = vsel %vm30, %v23, -inf
    %32 = vmax.xlane.f32.xlu0 %v31
    %v33 = vpop.xlane.xlu0 %32
    %v34 = vsub.f32 %v23, %v33
    %v35 = vmul.f32 %v34, 1.442695
    %v36 = vpow.pop %v35
    %v37 = vsel %vm30, %v36, 0.0
    %38 = vadd.xlane.f32.xlu0 %v37
    %v39 = vpop.xlane.xlu0 %38
    %v40 = vld [vmem:[#allocation2] sm:$0xff]
    %v41 = vmax.f32 %v40, %v33
    %v42 = vld [vmem:[#allocation3] sm:$0xff]
    %v43 = vsub.f32 %v40, %v41
    %v44 = vmul.f32 %v43, 1.442695
    %v45 = vpow.pop %v44
    %v46 = vmul.f32 %v42, %v45
    %v47 = vsub.f32 %v33, %v41
    %v48 = vmul.f32 %v47, 1.442695
    %v49 = vpow.pop %v48
    %v50 = vmul.f32 %v39, %v49
    %v51 = vadd.f32 %v46, %v50
    %vm52 = vcmask 7168
    %53 = vst.msk [vmem:[#allocation3] sm:$0xff] %vm52, %v51
    %54 = vst.msk [vmem:[#allocation2] sm:$0xff] %vm52, %v41
    %v55 = vld [vmem:[#allocation4] sm:$0xff]
    %56 = vset.pattern.permute.xlu0 0
    %57 = vperm.xlu0 %56, %v24
    %v58 = vpop.permute.xlu0 %57
    %vm59 = vcmp.eq.s32.totalorder %v29, %v58
    %v60 = vsel %vm59, %v23, 0.0
    %v61 = vsel %vm30, %v60, 0.0
    %62 = vadd.xlane.f32.xlu0 %v61
    %v63 = vpop.xlane.xlu0 %62
    %v64 = vadd.f32 %v55, %v63
    %65 = vst.msk [vmem:[#allocation4] sm:$0xff] %vm52, %v64
    // Predicated region
    $region18: #{tpu_custom_call.1} parent=1 // pred_check
      %p66 = pneg %p15
    $region19: #{tpu_custom_call.1} parent=1 // pred_check_branch
      %68 = sbr.rel (%p66) target = $region21
    $region20: #{tpu_custom_call.1} parent=1 // pred_region
      %v69 = vld [vmem:[#allocation2] sm:$0xff]
      %v70 = vld [vmem:[#allocation3] sm:$0xff]
      %v71 = vlog2.pop %v70
      %v72 = vmul.f32 %v71, 0.6931472
      %v73 = vadd.f32 %v69, %v72
      %v74 = vld [vmem:[#allocation4] sm:$0xff]
      %v75 = vsub.f32 %v73, %v74
      %v76 = vlaneseq
      %v77 = vshrl.u32 %v76, 7
      %s78 = smul.u32 0, 8
      %v79 = vstv %s78
      %v80 = vadd.s32 %v77, %v79
      %vm81 = vcmp.lt.s32.totalorder %v80, 8
      %v82 = vld [vmem:[%s2] sm:$0xff]
      %v83 = vmul.f32 %v75, %v82
      %v84 = vsel %vm81, %v83, 0.0
      %v85 = vsel %vm52, %v84, 0.0
      %86 = vadd.xlane.f32.xlu0 %v85
      %v87 = vpop.xlane.xlu0 %86
      %v88 = vrot.slane %v87, 4
      %v89 = vadd.f32 %v87, %v88
      %v90 = vrot.slane %v89, 2
      %v91 = vadd.f32 %v89, %v90
      %v92 = vrot.slane %v91, 1
      %v93 = vadd.f32 %v91, %v92
      %s94 = vtos %v93
      %s95 = scalar_lea.smem [#allocation5], 0
      %96 = sst [smem:[%s95]] %s94
    $region21: #{tpu_custom_call.1} parent=1 // pred_fallthru
      _
    // Predicated region
    $region22: #{tpu_custom_call.1} parent=1 // pred_check
      _
    $region23: #{tpu_custom_call.1} parent=1 // pred_check_branch
      %98 = sbr.rel (0) target = $region25
    $region24: #{tpu_custom_call.1} parent=1 // pred_region
      %s100 = ssub.s32 16, 16
      %101 = vsyncadd [#allocation6], %s100
      %104 = dma.smem_to_hbm [#allocation5], 16, %s3, [#allocation6]
    $region25: #{tpu_custom_call.1} parent=1 // pred_fallthru
      _
    // Predicated region
    $region26: #{tpu_custom_call.1} parent=1 // pred_check
      _
    $region27: #{tpu_custom_call.1} parent=1 // pred_check_branch
      %106 = sbr.rel (0) target = $region29
    $region28: #{tpu_custom_call.1} parent=1 // pred_region
      %107 = dma.done [#allocation6], 16
    $region29: #{tpu_custom_call.1} parent=1 // pred_fallthru
      _
    %108 = sfence
    %109 = vsyncpa [#allocation6], 1

</llo_original>
